<compile_context>
chip_gen: v7x
topology: tpu7x:2x2x1
jax: 0.10.0
libtpu: 0.0.40
codegen_flags: <defaults>
</compile_context>

<pallas_src>
import functools

import jax
import jax.numpy as jnp
import numpy as np
from jax.experimental import pallas as pl
from jax.experimental.pallas import tpu as pltpu


def _attention_kernel(members_ref, item_ref, params_ref, out_ref, *, G, D, H):
    GD, GH = G * D, G * H

    m = members_ref[...]                       # (TB, G*D) f32, lane-dense
    it = item_ref[...]                         # (TB, D)   f32

    # diff[b, g*D+d] = (G*m[b,g,d] - sum_j m[b,j,d]) * item[b,d]
    # Group-sum broadcast to every D-wide segment via cyclic lane rolls (XLU):
    # sum_{k=0..G-1} roll(m, k*D) puts sum_j m[b,j,d] at every lane g*D+d.
    s_tiled = m
    for g in range(1, G):
        s_tiled = s_tiled + pltpu.roll(m, g * D, axis=1)
    it_tiled = jnp.concatenate([it] * G, axis=1)            # (TB, G*D)
    diff = (jnp.float32(G) * m - s_tiled) * it_tiled        # (TB, G*D), VPU

    # Packed parameters (single VMEM buffer):
    w1_blk = params_ref[0:GD, :]               # (G*D, G*H) block-diagonal W1
    b1 = params_ref[GD:GD + 1, :]              # (1, G*H)   b1 tiled G times
    w2 = params_ref[GD + 1:GD + 2, :]          # (1, G*H)   w2 tiled G times
    b2 = params_ref[GD + 2:GD + 3, 0:1]        # (1, 1)

    # Layer 1: one MXU pass, K = G*D (=128), N = G*H (=64).
    h = jnp.dot(diff, w1_blk, preferred_element_type=jnp.float32) + b1
    h = jnp.maximum(h, 0.0)                    # (TB, G*H)

    # Layer 2 (16 -> 1): VPU multiply + segmented lane reduce (no N=1 matmul).
    t = h * w2                                 # (TB, G*H)
    cols = [jnp.sum(t[:, g * H:(g + 1) * H], axis=1, keepdims=True)
            for g in range(G)]                 # G x (TB, 1)
    logits = jnp.concatenate(cols, axis=1) + b2             # (TB, G)

    # Softmax over the group axis (exp -> EUP; reciprocal -> EUP + 1 NR step
    # to keep full f32 accuracy).
    mx = jnp.max(logits, axis=1, keepdims=True)
    e = jnp.exp(logits - mx)
    denom = jnp.sum(e, axis=1, keepdims=True)
    inv = pl.reciprocal(denom, approx=True)
    inv = inv * (2.0 - denom * inv)
    # Output is (TB, G) (G=4 lanes). Lane-sparse, but the output is ~1/32 of the
    # input traffic, so a padded lane-dense slab would cost more HBM than it saves.
    out_ref[...] = e * inv


def _pack_params(w1, b1, w2, b2, G):
    """Pack W1 (block-diag, tiled for the (B, G*D) layout), b1, w2, b2 into one
    (G*D + 3, G*H) f32 array -> a single parameter DMA."""
    D, H = w1.shape
    GD, GH = G * D, G * H
    w1 = w1.astype(jnp.float32)
    w1_blk = jnp.zeros((GD, GH), jnp.float32)
    for g in range(G):
        w1_blk = w1_blk.at[g * D:(g + 1) * D, g * H:(g + 1) * H].set(w1)
    b1_row = jnp.tile(jnp.reshape(b1.astype(jnp.float32), (1, H)), (1, G))
    w2_row = jnp.tile(jnp.reshape(w2.astype(jnp.float32), (1, H)), (1, G))
    b2_row = jnp.broadcast_to(jnp.reshape(b2.astype(jnp.float32), (1, 1)), (1, GH))
    return jnp.concatenate([w1_blk, b1_row, w2_row, b2_row], axis=0)


def _choose_tb(B):
    """Batch tile: full batch if small, otherwise a multiple-of-8 divisor."""
    if B <= 8:
        return B
    for tb in (1024, 512, 256, 128, 64, 32, 16, 8):
        if B % tb == 0:
            return tb
    return B  # not a multiple of 8: single block over the whole batch


def attention_layer(members_embeds, item_embeds, w1, b1, w2, b2):
    B, G, D = members_embeds.shape
    H = w1.shape[1]
    GD, GH = G * D, G * H

    # Row-major flatten -> members_flat[b, g*D + d] == members[b, g, d] (free).
    members_flat = jnp.reshape(members_embeds.astype(jnp.float32), (B, GD))
    item_embeds = item_embeds.astype(jnp.float32)
    params = _pack_params(w1, b1, w2, b2, G)

    TB = _choose_tb(B)
    grid = (B // TB,)

    kernel = functools.partial(_attention_kernel, G=G, D=D, H=H)
    return pl.pallas_call(
        kernel,
        out_shape=jax.ShapeDtypeStruct((B, G), jnp.float32),
        grid=grid,
        in_specs=[
            pl.BlockSpec((TB, GD), lambda i: (i, 0)),       # members (lane-dense)
            pl.BlockSpec((TB, D), lambda i: (i, 0)),        # item
            pl.BlockSpec((GD + 3, GH), lambda i: (0, 0)),   # packed params (1 DMA)
        ],
        out_specs=pl.BlockSpec((TB, G), lambda i: (i, 0)),
        compiler_params=pltpu.CompilerParams(
            dimension_semantics=("parallel",)),             # megacore / v7x 2-TC
    )(members_flat, item_embeds, params)


def reference(members_embeds, item_embeds, w1, b1, w2, b2):
    """Literal transcription of AttentionLayer.forward (dropout p=0 == identity)."""
    B, G, D = members_embeds.shape
    logits = []
    for i in range(G):
        ui = members_embeds[:, i]
        acc = 0.0
        for j in range(G):
            if i == j:
                continue
            acc = acc + (ui - members_embeds[:, j]) * item_embeds
        h = jnp.maximum(acc @ w1 + b1[None, :], 0.0)
        logits.append(h @ w2[:, None] + b2)
    logits = jnp.concatenate(logits, axis=1)                # (B, G)
    return jax.nn.softmax(logits, axis=1)


if __name__ == "__main__":
    # B exercises the batch grid (TB=8, grid=(2,)); G*D = 128 -> lane-dense layout;
    # H is fixed at 16 by the module (nn.Linear(embedding_dim, 16)).
    B, G, D, H = 16, 4, 32, 16

    key = jax.random.PRNGKey(0)
    k_m, k_i, k_w1, k_b1, k_w2, k_b2 = jax.random.split(key, 6)

    members = jax.random.normal(k_m, (B, G, D), dtype=jnp.float32)
    item = jax.random.normal(k_i, (B, D), dtype=jnp.float32)

    # nn.Linear(D,16) and nn.Linear(16,1), stored transposed (in-dim first).
    w1 = jax.random.normal(k_w1, (D, H), dtype=jnp.float32) * 0.1
    b1 = jax.random.normal(k_b1, (H,), dtype=jnp.float32) * 0.1
    w2 = jax.random.normal(k_w2, (H,), dtype=jnp.float32) * 0.1
    b2 = jax.random.normal(k_b2, (), dtype=jnp.float32) * 0.1

    fn = jax.jit(attention_layer)
    out = jax.block_until_ready(fn(members, item, w1, b1, w2, b2))

    ref = jax.block_until_ready(reference(members, item, w1, b1, w2, b2))
    assert out.shape == (B, G)
    # 1e-4 tolerance: EUP approx-reciprocal + one Newton step is ~1e-7 relative.
    assert np.allclose(np.asarray(out), np.asarray(ref), atol=1e-4, rtol=1e-4), (
        float(np.abs(np.asarray(out) - np.asarray(ref)).max()))

    print("KERNEL_OK")
</pallas_src>

<mosaic_0001>
module attributes {stable_mosaic.version = 11 : i64} {
  func.func @_attention_kernel(%arg0: i32, %arg1: memref<16x128xf32, #tpu.memory_space<vmem>>, %arg2: memref<16x32xf32, #tpu.memory_space<vmem>>, %arg3: memref<131x64xf32, #tpu.memory_space<vmem>>, %arg4: memref<16x4xf32, #tpu.memory_space<vmem>>) attributes {dimension_semantics = [#tpu.dimension_semantics<parallel>], iteration_bounds = array<i64: 1>, scalar_prefetch = 0 : i64, scratch_operands = 0 : i64, tpu.core_type = #tpu.core_type<tc>, window_params = [{transform_indices = @transform_0, window_bounds = array<i64: 16, 128>}, {transform_indices = @transform_1, window_bounds = array<i64: 16, 32>}, {pipeline_mode = #tpu.pipeline_mode<synchronous>, transform_indices = @transform_2, window_bounds = array<i64: 131, 64>}, {transform_indices = @transform_3, window_bounds = array<i64: 16, 4>}]} {
    %c0 = arith.constant 0 : index
    %c0_0 = arith.constant 0 : index
    %0 = vector.load %arg1[%c0, %c0_0] : memref<16x128xf32, #tpu.memory_space<vmem>>, vector<16x128xf32>
    %c0_1 = arith.constant 0 : index
    %c0_2 = arith.constant 0 : index
    %1 = vector.load %arg2[%c0_1, %c0_2] : memref<16x32xf32, #tpu.memory_space<vmem>>, vector<16x32xf32>
    %c32_i32 = arith.constant 32 : i32
    %2 = tpu.dynamic_rotate %0 by %c32_i32 dim 1 : vector<16x128xf32>, i32 -> vector<16x128xf32>
    %3 = arith.addf %0, %2 : vector<16x128xf32>
    %c64_i32 = arith.constant 64 : i32
    %4 = tpu.dynamic_rotate %0 by %c64_i32 dim 1 : vector<16x128xf32>, i32 -> vector<16x128xf32>
    %5 = arith.addf %3, %4 : vector<16x128xf32>
    %c96_i32 = arith.constant 96 : i32
    %6 = tpu.dynamic_rotate %0 by %c96_i32 dim 1 : vector<16x128xf32>, i32 -> vector<16x128xf32>
    %7 = arith.addf %5, %6 : vector<16x128xf32>
    %8 = tpu.concatenate %1, %1, %1, %1 in 1 : vector<16x32xf32>, vector<16x32xf32>, vector<16x32xf32>, vector<16x32xf32> -> vector<16x128xf32>
    %cst = arith.constant 4.000000e+00 : f32
    %9 = vector.broadcast %cst : f32 to vector<16x128xf32>
    %10 = arith.mulf %9, %0 : vector<16x128xf32>
    %11 = arith.subf %10, %7 : vector<16x128xf32>
    %12 = arith.mulf %11, %8 : vector<16x128xf32>
    %c0_3 = arith.constant 0 : index
    %c0_4 = arith.constant 0 : index
    %13 = vector.load %arg3[%c0_3, %c0_4] : memref<131x64xf32, #tpu.memory_space<vmem>>, vector<128x64xf32>
    %c128 = arith.constant 128 : index
    %c0_5 = arith.constant 0 : index
    %14 = vector.load %arg3[%c128, %c0_5] : memref<131x64xf32, #tpu.memory_space<vmem>>, vector<1x64xf32>
    %c129 = arith.constant 129 : index
    %c0_6 = arith.constant 0 : index
    %15 = vector.load %arg3[%c129, %c0_6] : memref<131x64xf32, #tpu.memory_space<vmem>>, vector<1x64xf32>
    %c130 = arith.constant 130 : index
    %c0_7 = arith.constant 0 : index
    %16 = vector.load %arg3[%c130, %c0_7] : memref<131x64xf32, #tpu.memory_space<vmem>>, vector<1x1xf32>
    %cst_8 = arith.constant dense<0.000000e+00> : vector<16x64xf32>
    %17 = tpu.matmul %12, %13, %cst_8 {dimension_numbers = #tpu.dot_dimension_numbers<[1], [0], [0], [1], [0, 0, 1, 1], [], []>} : vector<16x128xf32>, vector<128x64xf32>, vector<16x64xf32> -> vector<16x64xf32>
    %18 = vector.broadcast %14 : vector<1x64xf32> to vector<16x64xf32>
    %19 = arith.addf %17, %18 : vector<16x64xf32>
    %cst_9 = arith.constant 0.000000e+00 : f32
    %20 = vector.broadcast %cst_9 : f32 to vector<16x64xf32>
    %21 = arith.maximumf %19, %20 : vector<16x64xf32>
    %22 = vector.broadcast %15 : vector<1x64xf32> to vector<16x64xf32>
    %23 = arith.mulf %21, %22 : vector<16x64xf32>
    %24 = vector.extract_strided_slice %23 {offsets = [0, 0], sizes = [16, 16], strides = [1, 1]} : vector<16x64xf32> to vector<16x16xf32>
    %cst_10 = arith.constant dense<0.000000e+00> : vector<16xf32>
    %25 = vector.multi_reduction <add>, %24, %cst_10 [1] : vector<16x16xf32> to vector<16xf32>
    %26 = vector.shape_cast %25 : vector<16xf32> to vector<16x1xf32>
    %27 = vector.extract_strided_slice %23 {offsets = [0, 16], sizes = [16, 16], strides = [1, 1]} : vector<16x64xf32> to vector<16x16xf32>
    %cst_11 = arith.constant dense<0.000000e+00> : vector<16xf32>
    %28 = vector.multi_reduction <add>, %27, %cst_11 [1] : vector<16x16xf32> to vector<16xf32>
    %29 = vector.shape_cast %28 : vector<16xf32> to vector<16x1xf32>
    %30 = vector.extract_strided_slice %23 {offsets = [0, 32], sizes = [16, 16], strides = [1, 1]} : vector<16x64xf32> to vector<16x16xf32>
    %cst_12 = arith.constant dense<0.000000e+00> : vector<16xf32>
    %31 = vector.multi_reduction <add>, %30, %cst_12 [1] : vector<16x16xf32> to vector<16xf32>
    %32 = vector.shape_cast %31 : vector<16xf32> to vector<16x1xf32>
    %33 = vector.extract_strided_slice %23 {offsets = [0, 48], sizes = [16, 16], strides = [1, 1]} : vector<16x64xf32> to vector<16x16xf32>
    %cst_13 = arith.constant dense<0.000000e+00> : vector<16xf32>
    %34 = vector.multi_reduction <add>, %33, %cst_13 [1] : vector<16x16xf32> to vector<16xf32>
    %35 = vector.shape_cast %34 : vector<16xf32> to vector<16x1xf32>
    %36 = tpu.concatenate %26, %29, %32, %35 in 1 : vector<16x1xf32>, vector<16x1xf32>, vector<16x1xf32>, vector<16x1xf32> -> vector<16x4xf32>
    %37 = vector.broadcast %16 : vector<1x1xf32> to vector<16x4xf32>
    %38 = arith.addf %36, %37 : vector<16x4xf32>
    %cst_14 = arith.constant dense<0xFF800000> : vector<16xf32>
    %39 = vector.multi_reduction <maximumf>, %38, %cst_14 [1] : vector<16x4xf32> to vector<16xf32>
    %40 = vector.shape_cast %39 : vector<16xf32> to vector<16x1xf32>
    %41 = vector.broadcast %40 : vector<16x1xf32> to vector<16x4xf32>
    %42 = arith.subf %38, %41 : vector<16x4xf32>
    %43 = math.exp %42 : vector<16x4xf32>
    %cst_15 = arith.constant dense<0.000000e+00> : vector<16xf32>
    %44 = vector.multi_reduction <add>, %43, %cst_15 [1] : vector<16x4xf32> to vector<16xf32>
    %45 = vector.shape_cast %44 : vector<16xf32> to vector<16x1xf32>
    %46 = tpu.reciprocal %45 {approx = true} : vector<16x1xf32> -> vector<16x1xf32>
    %47 = arith.mulf %45, %46 : vector<16x1xf32>
    %cst_16 = arith.constant 2.000000e+00 : f32
    %48 = vector.broadcast %cst_16 : f32 to vector<16x1xf32>
    %49 = arith.subf %48, %47 : vector<16x1xf32>
    %50 = arith.mulf %46, %49 : vector<16x1xf32>
    %51 = vector.broadcast %50 : vector<16x1xf32> to vector<16x4xf32>
    %52 = arith.mulf %43, %51 : vector<16x4xf32>
    %c0_17 = arith.constant 0 : index
    %c0_18 = arith.constant 0 : index
    %53 = vector.load %arg4[%c0_17, %c0_18] : memref<16x4xf32, #tpu.memory_space<vmem>>, vector<16x4xf32>
    tpu.vector_store %arg4[%c0_17, %c0_18], %52 {strides = array<i32>} : memref<16x4xf32, #tpu.memory_space<vmem>>, vector<16x4xf32>,
    return
  }
  func.func @transform_0(%arg0: i32) -> (i32, i32) {
    %c0_i32 = arith.constant 0 : i32
    %c0_i32_0 = arith.constant 0 : i32
    return %arg0, %c0_i32 : i32, i32
  }
  func.func @transform_1(%arg0: i32) -> (i32, i32) {
    %c0_i32 = arith.constant 0 : i32
    %c0_i32_0 = arith.constant 0 : i32
    return %arg0, %c0_i32 : i32, i32
  }
  func.func @transform_2(%arg0: i32) -> (i32, i32) {
    %c0_i32 = arith.constant 0 : i32
    %c0_i32_0 = arith.constant 0 : i32
    %c0_i32_1 = arith.constant 0 : i32
    return %c0_i32, %c0_i32_0 : i32, i32
  }
  func.func @transform_3(%arg0: i32) -> (i32, i32) {
    %c0_i32 = arith.constant 0 : i32
    %c0_i32_0 = arith.constant 0 : i32
    return %arg0, %c0_i32 : i32, i32
  }
}

</mosaic_0001>

<llo_original>
// kernel: attention_layer.1
$region0: #{attention_layer.1}
  #allocation0 [shape = 'u32[]', space=smem, size = 0x4, offset = 0x4, fixed_abs, tag = 'smem constant byte address 0x4 - core index']
  #allocation1 [shape = 'u32[144,128]{1,0:T(1,128)}', space=vmem, size = 0x12000, scoped, tag = 'internal scratch']
  %s0 = inlined_call_operand.vmem [shape: f32[16,128], index: 0, kind: input, shape index: {}]
  %s1 = inlined_call_operand.vmem [shape: f32[16,32], index: 1, kind: input, shape index: {}]
  %s2 = inlined_call_operand.vmem [shape: f32[131,64], index: 2, kind: input, shape index: {}]
  %s3 = inlined_call_operand.vmem [shape: f32[16,4], index: 3, kind: output, shape index: {}]
  %s4 = sld [smem:[#allocation0]]
  $region22: #{attention_layer.1} parent=0
    _
  %s6 = ssub.s32 1, %s4
  %s7 = scalar_select 0, %s6, %s4
  // Predicated region
  $region2: #{attention_layer.1} parent=0 // pred_check
    _
  $region3: #{attention_layer.1} parent=0 // pred_check_branch
    %9 = sbr.rel (0) target = $region5
  $region4: #{attention_layer.1} parent=0 // pred_region
    _
  $region5: #{attention_layer.1} parent=0 // pred_fallthru
    _
  // Predicated region
  $region6: #{attention_layer.1} parent=0 // pred_check
    _
  $region7: #{attention_layer.1} parent=0 // pred_check_branch
    %11 = sbr.rel (0) target = $region9
  $region8: #{attention_layer.1} parent=0 // pred_region
    _
  $region9: #{attention_layer.1} parent=0 // pred_fallthru
    _
  // Predicated region
  $region10: #{attention_layer.1} parent=0 // pred_check
    _
  $region11: #{attention_layer.1} parent=0 // pred_check_branch
    %13 = sbr.rel (0) target = $region13
  $region12: #{attention_layer.1} parent=0 // pred_region
    _
  $region13: #{attention_layer.1} parent=0 // pred_fallthru
    _
  %v14 = vld [vmem:[%s0] sm:$0xff]
  %v15 = vld [vmem:[%s0 + $0x8] sm:$0xff]
  %v16 = vld [vmem:[%s1] sm:$0xff]
  %v17 = vld [vmem:[%s1 + $0x8] sm:$0xff]
  %18 = vrot.lane.b32.xlu0 %v14, 32
  %v19 = vpop.permute.xlu0 %18
  %20 = vrot.lane.b32.xlu0 %v15, 32
  %v21 = vpop.permute.xlu0 %20
  %v22 = vadd.f32 %v14, %v19
  %v23 = vadd.f32 %v15, %v21
  %24 = vrot.lane.b32.xlu0 %v14, 64
  %v25 = vpop.permute.xlu0 %24
  %26 = vrot.lane.b32.xlu0 %v15, 64
  %v27 = vpop.permute.xlu0 %26
  %v28 = vadd.f32 %v22, %v25
  %v29 = vadd.f32 %v23, %v27
  %30 = vrot.lane.b32.xlu0 %v14, 96
  %v31 = vpop.permute.xlu0 %30
  %32 = vrot.lane.b32.xlu0 %v15, 96
  %v33 = vpop.permute.xlu0 %32
  %v34 = vadd.f32 %v28, %v31
  %v35 = vadd.f32 %v29, %v33
  %38 = vrot.lane.b32.xlu0 %v16, 32
  %v39 = vpop.permute.xlu0 %38
  %40 = vrot.lane.b32.xlu0 %v17, 32
  %v41 = vpop.permute.xlu0 %40
  %44 = vrot.lane.b32.xlu0 %v16, 64
  %v45 = vpop.permute.xlu0 %44
  %46 = vrot.lane.b32.xlu0 %v17, 64
  %v47 = vpop.permute.xlu0 %46
  %50 = vrot.lane.b32.xlu0 %v16, 96
  %v51 = vpop.permute.xlu0 %50
  %52 = vrot.lane.b32.xlu0 %v17, 96
  %v53 = vpop.permute.xlu0 %52
  %vm56 = vcmask 261120
  %v57 = vsel %vm56, %v16, %v39
  %v58 = vsel %vm56, %v17, %v41
  %vm59 = vcmask 523264
  %v60 = vsel %vm59, %v57, %v45
  %v61 = vsel %vm59, %v58, %v47
  %vm62 = vcmask 785408
  %v63 = vsel %vm62, %v60, %v51
  %v64 = vsel %vm62, %v61, %v53
  %v65 = vmul.f32 %v14, 4.0
  %v66 = vmul.f32 %v15, 4.0
  %v67 = vsub.f32 %v65, %v34
  %v68 = vsub.f32 %v66, %v35
  %v69 = vmul.f32 %v67, %v63
  %v70 = vmul.f32 %v68, %v64
  %v71 = vld [vmem:[%s2] sm:$0xff]
  %v72 = vld [vmem:[%s2 + $0x8] sm:$0xff]
  %v73 = vld [vmem:[%s2 + $0x10] sm:$0xff]
  %v74 = vld [vmem:[%s2 + $0x18] sm:$0xff]
  %v75 = vld [vmem:[%s2 + $0x20] sm:$0xff]
  %v76 = vld [vmem:[%s2 + $0x28] sm:$0xff]
  %v77 = vld [vmem:[%s2 + $0x30] sm:$0xff]
  %v78 = vld [vmem:[%s2 + $0x38] sm:$0xff]
  %v79 = vld [vmem:[%s2 + $0x40] sm:$0xff]
  %v80 = vld [vmem:[%s2 + $0x48] sm:$0xff]
  %v81 = vld [vmem:[%s2 + $0x50] sm:$0xff]
  %v82 = vld [vmem:[%s2 + $0x58] sm:$0xff]
  %v83 = vld [vmem:[%s2 + $0x60] sm:$0xff]
  %v84 = vld [vmem:[%s2 + $0x68] sm:$0xff]
  %v85 = vld [vmem:[%s2 + $0x70] sm:$0xff]
  %v86 = vld [vmem:[%s2 + $0x78] sm:$0xff]
  %v87 = vld [vmem:[%s2 + $0x80] sm:$0x1]
  %v88 = vld [vmem:[%s2 + $0x81] sm:$0x1]
  %v89 = vld [vmem:[%s2 + $0x82] sm:$0x1]
  %v90 = vlaneseq
  %v91 = vshrl.u32 %v90, 7
  %v92 = vsub.s32 0, %v91
  %v93 = vrot.slane %v87, %v92
  %94 = vmatprep.subr.mxu0 0.0
  %95 = vmatpush1.msra.mxu0 %v71
  %96 = vmatprep.subr.mxu0 0.0
  %97 = vmatpush1.msra.mxu0 %v72
  %98 = vmatprep.subr.mxu0 0.0
  %99 = vmatpush1.msra.mxu0 %v73
  %100 = vmatprep.subr.mxu0 0.0
  %101 = vmatpush1.msra.mxu0 %v74
  %102 = vmatprep.subr.mxu0 0.0
  %103 = vmatpush1.msra.mxu0 %v75
  %104 = vmatprep.subr.mxu0 0.0
  %105 = vmatpush1.msra.mxu0 %v76
  %106 = vmatprep.subr.mxu0 0.0
  %107 = vmatpush1.msra.mxu0 %v77
  %108 = vmatprep.subr.mxu0 0.0
  %109 = vmatpush1.msra.mxu0 %v78
  %110 = vmatprep.subr.mxu0 0.0
  %111 = vmatpush1.msra.mxu0 %v79
  %112 = vmatprep.subr.mxu0 0.0
  %113 = vmatpush1.msra.mxu0 %v80
  %114 = vmatprep.subr.mxu0 0.0
  %115 = vmatpush1.msra.mxu0 %v81
  %116 = vmatprep.subr.mxu0 0.0
  %117 = vmatpush1.msra.mxu0 %v82
  %118 = vmatprep.subr.mxu0 0.0
  %119 = vmatpush1.msra.mxu0 %v83
  %120 = vmatprep.subr.mxu0 0.0
  %121 = vmatpush1.msra.mxu0 %v84
  %122 = vmatprep.subr.mxu0 0.0
  %123 = vmatpush1.msra.mxu0 %v85
  %124 = vmatprep.subr.mxu0 0.0
  %125 = vmatpush1.msra.mxu0 %v86
  %126 = vmatprep.subr.mxu0 0.0
  %127 = vmatpush1.msra.mxu0 0.0
  %128 = vmatprep.subr.mxu0 0.0
  %129 = vmatpush1.msra.mxu0 0.0
  %130 = vmatprep.subr.mxu0 0.0
  %131 = vmatpush1.msra.mxu0 0.0
  %132 = vmatprep.subr.mxu0 0.0
  %133 = vmatpush1.msra.mxu0 0.0
  %134 = vmatprep.subr.mxu0 0.0
  %135 = vmatpush1.msra.mxu0 0.0
  %136 = vmatprep.subr.mxu0 0.0
  %137 = vmatpush1.msra.mxu0 0.0
  %138 = vmatprep.subr.mxu0 0.0
  %139 = vmatpush1.msra.mxu0 0.0
  %140 = vmatprep.subr.mxu0 0.0
  %141 = vmatpush1.msra.mxu0 0.0
  %142 = vmatprep.subr.mxu0 0.0
  %143 = vmatpush1.msra.mxu0 0.0
  %144 = vmatprep.subr.mxu0 0.0
  %145 = vmatpush1.msra.mxu0 0.0
  %146 = vmatprep.subr.mxu0 0.0
  %147 = vmatpush1.msra.mxu0 0.0
  %148 = vmatprep.subr.mxu0 0.0
  %149 = vmatpush1.msra.mxu0 0.0
  %150 = vmatprep.subr.mxu0 0.0
  %151 = vmatpush1.msra.mxu0 0.0
  %152 = vmatprep.subr.mxu0 0.0
  %153 = vmatpush1.msra.mxu0 0.0
  %154 = vmatprep.subr.mxu0 0.0
  %155 = vmatpush1.msra.mxu0 0.0
  %156 = vmatprep.subr.mxu0 0.0
  %157 = vmatpush1.msra.mxu0 0.0
  %158 = vmatprep.mubr.f32.mxu0 0.0
  %159 = vmatmul.mubr.f32.gmra.mrb[0].mxu0 %v69
  %v160 = vpop.f32.mrb[0].mxu0
  %v161 = vadd.f32 %v93, %v160
  %v162 = vpop.f32.mrb[0].mxu0
  %163 = vmatprep.mubr.f32.mxu0 0.0
  %164 = vmatmul.mubr.f32.gmra.mrb[0].mxu0 %v70
  %v165 = vpop.f32.mrb[0].mxu0
  %v166 = vadd.f32 %v93, %v165
  %v167 = vpop.f32.mrb[0].mxu0
  %168 = vdwg.mxu0
  %v169 = vmax.f32 %v161, 0.0
  %v170 = vmax.f32 %v166, 0.0
  %v171 = vlaneseq
  %v172 = vshrl.u32 %v171, 7
  %v173 = vsub.s32 0, %v172
  %v174 = vrot.slane %v88, %v173
  %v175 = vmul.f32 %v169, %v174
  %v176 = vmul.f32 %v170, %v174
  %vm177 = vcmask 130048
  %v178 = vsel %vm177, %v175, 0.0
  %179 = vadd.xlane.f32.xlu0 %v178
  %v180 = vpop.xlane.xlu0 %179
  %v181 = vsel %vm177, %v176, 0.0
  %182 = vadd.xlane.f32.xlu0 %v181
  %v183 = vpop.xlane.xlu0 %182
  %186 = vrot.lane.b32.xlu0 %v175, 112
  %v187 = vpop.permute.xlu0 %186
  %188 = vrot.lane.b32.xlu0 %v176, 112
  %v189 = vpop.permute.xlu0 %188
  %v192 = vsel %vm177, %v187, 0.0
  %193 = vadd.xlane.f32.xlu0 %v192
  %v194 = vpop.xlane.xlu0 %193
  %v195 = vsel %vm177, %v189, 0.0
  %196 = vadd.xlane.f32.xlu0 %v195
  %v197 = vpop.xlane.xlu0 %196
  %198 = vrot.lane.b32.xlu0 %v175, 96
  %v199 = vpop.permute.xlu0 %198
  %200 = vrot.lane.b32.xlu0 %v176, 96
  %v201 = vpop.permute.xlu0 %200
  %v204 = vsel %vm177, %v199, 0.0
  %205 = vadd.xlane.f32.xlu0 %v204
  %v206 = vpop.xlane.xlu0 %205
  %v207 = vsel %vm177, %v201, 0.0
  %208 = vadd.xlane.f32.xlu0 %v207
  %v209 = vpop.xlane.xlu0 %208
  %210 = vrot.lane.b32.xlu0 %v175, 80
  %v211 = vpop.permute.xlu0 %210
  %212 = vrot.lane.b32.xlu0 %v176, 80
  %v213 = vpop.permute.xlu0 %212
  %v216 = vsel %vm177, %v211, 0.0
  %217 = vadd.xlane.f32.xlu0 %v216
  %v218 = vpop.xlane.xlu0 %217
  %v219 = vsel %vm177, %v213, 0.0
  %220 = vadd.xlane.f32.xlu0 %v219
  %v221 = vpop.xlane.xlu0 %220
  %vm222 = vcmask 7168
  %v223 = vsel %vm222, %v180, %v194
  %v224 = vsel %vm222, %v183, %v197
  %vm225 = vcmask 15360
  %v226 = vsel %vm225, %v223, %v206
  %v227 = vsel %vm225, %v224, %v209
  %vm228 = vcmask 23552
  %v229 = vsel %vm228, %v226, %v218
  %v230 = vsel %vm228, %v227, %v221
  %s232 = vtos %v89
  %v233 = vstv %s232
  %v235 = vadd.f32 %v229, %v233
  %v236 = vadd.f32 %v230, %v233
  %vm237 = vcmask 31744
  %v238 = vsel %vm237, %v235, -inf
  %239 = vmax.xlane.f32.xlu0 %v238
  %v240 = vpop.xlane.xlu0 %239
  %v241 = vsel %vm237, %v236, -inf
  %242 = vmax.xlane.f32.xlu0 %v241
  %v243 = vpop.xlane.xlu0 %242
  %v244 = vsub.f32 %v235, %v240
  %v245 = vsub.f32 %v236, %v243
  %v246 = vmul.f32 %v244, 1.442695
  %v247 = vpow.pop %v246
  %v248 = vmul.f32 %v245, 1.442695
  %v249 = vpow.pop %v248
  %v250 = vsel %vm237, %v247, 0.0
  %251 = vadd.xlane.f32.xlu0 %v250
  %v252 = vpop.xlane.xlu0 %251
  %v253 = vsel %vm237, %v249, 0.0
  %254 = vadd.xlane.f32.xlu0 %v253
  %v255 = vpop.xlane.xlu0 %254
  %v256 = vrcp.pop %v252
  %v257 = vrcp.pop %v255
  %v258 = vmul.f32 %v252, %v256
  %v259 = vmul.f32 %v255, %v257
  %v260 = vsub.f32 2.0, %v258
  %v261 = vsub.f32 2.0, %v259
  %v262 = vmul.f32 %v256, %v260
  %v263 = vmul.f32 %v257, %v261
  %v264 = vmul.f32 %v247, %v262
  %v265 = vmul.f32 %v249, %v263
  %266 = vst.msk [vmem:[%s3] sm:$0xff] %vm237, %v264
  %267 = vst.msk [vmem:[%s3 + $0x8] sm:$0xff] %vm237, %v265
  // Predicated region
  $region14: #{attention_layer.1} parent=0 // pred_check
    _
  $region15: #{attention_layer.1} parent=0 // pred_check_branch
    %269 = sbr.rel (0) target = $region17
  $region16: #{attention_layer.1} parent=0 // pred_region
    _
  $region17: #{attention_layer.1} parent=0 // pred_fallthru
    _
  // Predicated region
  $region18: #{attention_layer.1} parent=0 // pred_check
    _
  $region19: #{attention_layer.1} parent=0 // pred_check_branch
    %271 = sbr.rel (0) target = $region21
  $region20: #{attention_layer.1} parent=0 // pred_region
    _
  $region21: #{attention_layer.1} parent=0 // pred_fallthru
    _

</llo_original>
